<compile_context>
chip_gen: v7x
topology: tpu7x:2x2x1
jax: 0.10.0
libtpu: 0.0.40
codegen_flags: <defaults>
</compile_context>

<pallas_src>
import jax
import jax.numpy as jnp
from jax.experimental import pallas as pl
from jax.experimental.pallas import tpu as pltpu


def _round_up(n: int, m: int) -> int:
    return ((n + m - 1) // m) * m


def mlp_kernel(x_ref, w1_ref, b1_ref, w2_ref, b2_ref, out_ref):
    # Hidden layer: bf16 operands, f32 accumulation on the MXU.
    h = jnp.dot(x_ref[...], w1_ref[...], preferred_element_type=jnp.float32)
    # Bias + sigmoid in f32 (exp/reciprocal run on the EUP slot — free here).
    h = jax.nn.sigmoid(h + b1_ref[...])
    # Output layer: cast activations back to bf16 for the MXU.
    logits = jnp.dot(h.astype(jnp.bfloat16), w2_ref[...],
                     preferred_element_type=jnp.float32)
    out_ref[...] = (logits + b2_ref[...]).astype(out_ref.dtype)


def make_mlp_forward(w1, b1, w2, b2, *, max_batch_tile=1024):
    """Return a jit-compiled forward(x) with weights pre-packed exactly once.

    PyTorch nn.Linear layout: w1 [H, F], b1 [H], w2 [C, H], b2 [C].
    """
    H, F = w1.shape
    C = w2.shape[0]
    LANE = 128
    H_p = _round_up(H, LANE)
    C_p = _round_up(C, LANE)

    # --- one-time prepack (hoisted out of the per-call hot path) -----------
    # Transpose to MXU-friendly [K, N], cast to bf16, zero-pad lane dims.
    # Zero-padding keeps the math exact:
    #  - padded hidden lanes evaluate to sigmoid(0)=0.5, but the matching rows
    #    of W2^T are zero, so they contribute nothing to the logits;
    #  - padded C columns (zero weights + zero bias) are sliced away below.
    w1t = jnp.zeros((F, H_p), jnp.bfloat16).at[:, :H].set(w1.T.astype(jnp.bfloat16))
    w2t = jnp.zeros((H_p, C_p), jnp.bfloat16).at[:H, :C].set(w2.T.astype(jnp.bfloat16))
    b1p = jnp.zeros((1, H_p), jnp.float32).at[0, :H].set(b1.astype(jnp.float32))
    b2p = jnp.zeros((1, C_p), jnp.float32).at[0, :C].set(b2.astype(jnp.float32))
    w1t, w2t, b1p, b2p = jax.device_put((w1t, w2t, b1p, b2p))

    @jax.jit
    def forward(x):
        B, Fx = x.shape
        assert Fx == F, (Fx, F)

        # Collapse the grid to a single step whenever the batch fits: the
        # kernel is overhead/DMA-bound (MXU work is ~ns scale), so fewer grid
        # steps win.  Batch tile stays a multiple of 16 (bf16 sublane pack).
        B_16 = _round_up(B, 16)
        if B_16 <= max_batch_tile:
            tb = B_p = B_16
        else:
            tb = max_batch_tile
            B_p = _round_up(B, tb)

        # x keeps its native feature width (block last dim == full array dim
        # is legal); padding F to 128 would only double the streamed bytes.
        # This pad + bf16 cast fuses with the launch under jit.
        xp = jnp.zeros((B_p, F), jnp.bfloat16).at[:B, :].set(x.astype(jnp.bfloat16))

        out = pl.pallas_call(
            mlp_kernel,
            out_shape=jax.ShapeDtypeStruct((B_p, C_p), jnp.float32),
            grid_spec=pltpu.PrefetchScalarGridSpec(
                num_scalar_prefetch=0,
                grid=(B_p // tb,),   # == 1 for small batches
                in_specs=[
                    # x / out tiles march over the batch; weights/biases are
                    # grid-invariant and single-buffered (stay VMEM-resident
                    # without doubling their footprint).
                    pl.BlockSpec((tb, F), lambda i: (i, 0)),
                    pl.BlockSpec((F, H_p), lambda i: (0, 0),
                                 pipeline_mode=pl.Buffered(1)),
                    pl.BlockSpec((1, H_p), lambda i: (0, 0),
                                 pipeline_mode=pl.Buffered(1)),
                    pl.BlockSpec((H_p, C_p), lambda i: (0, 0),
                                 pipeline_mode=pl.Buffered(1)),
                    pl.BlockSpec((1, C_p), lambda i: (0, 0),
                                 pipeline_mode=pl.Buffered(1)),
                ],
                out_specs=pl.BlockSpec((tb, C_p), lambda i: (i, 0)),
            ),
            # Single/few-step grid: don't try to shard it across TensorCores;
            # that's pure overhead (duplicated weight DMA + sync) at this size.
            compiler_params=pltpu.CompilerParams(
                dimension_semantics=("arbitrary",)),
        )(xp, w1t, b1p, w2t, b2p)

        # Slice off padding; fuses under jit.  Keep f32-exact logits.
        return out[:B, :C].astype(x.dtype)

    return forward


def mlp_reference(x, w1, b1, w2, b2):
    h = jax.nn.sigmoid(x @ w1.T + b1)
    return h @ w2.T + b2


if __name__ == "__main__":
    # Small shapes consistent with the module (features, hidden, classes).
    B, F, H, C = 256, 64, 32, 10

    key = jax.random.PRNGKey(0)
    kx, kw1, kw2 = jax.random.split(key, 3)

    # Deterministic parameter init mirroring the PyTorch module:
    #   weights ~ N(0, 0.1), biases = 0
    x = jax.random.normal(kx, (B, F), dtype=jnp.float32)
    w1 = 0.1 * jax.random.normal(kw1, (H, F), dtype=jnp.float32)
    b1 = jnp.zeros((H,), dtype=jnp.float32)
    w2 = 0.1 * jax.random.normal(kw2, (C, H), dtype=jnp.float32)
    b2 = jnp.zeros((C,), dtype=jnp.float32)

    forward = make_mlp_forward(w1, b1, w2, b2)   # one-time prepack + jit
    logits = jax.block_until_ready(forward(x))

    ref = mlp_reference(x, w1, b1, w2, b2)
    assert logits.shape == (B, C)
    # bf16 MXU inputs vs f32 reference -> relaxed tolerance.
    assert jnp.allclose(logits, ref, atol=2e-2, rtol=2e-2), (
        float(jnp.max(jnp.abs(logits - ref))))

    print("KERNEL_OK")
</pallas_src>

<mosaic_0001>
module attributes {stable_mosaic.version = 11 : i64} {
  func.func @mlp_kernel(%arg0: i32, %arg1: memref<256x64xbf16, #tpu.memory_space<vmem>>, %arg2: memref<64x128xbf16, #tpu.memory_space<vmem>>, %arg3: memref<1x128xf32, #tpu.memory_space<vmem>>, %arg4: memref<128x128xbf16, #tpu.memory_space<vmem>>, %arg5: memref<1x128xf32, #tpu.memory_space<vmem>>, %arg6: memref<256x128xf32, #tpu.memory_space<vmem>>) attributes {dimension_semantics = [#tpu.dimension_semantics<arbitrary>], iteration_bounds = array<i64: 1>, scalar_prefetch = 0 : i64, scratch_operands = 0 : i64, tpu.core_type = #tpu.core_type<tc>, window_params = [{transform_indices = @transform_0, window_bounds = array<i64: 256, 64>}, {pipeline_mode = #tpu.pipeline_mode<synchronous>, transform_indices = @transform_1, window_bounds = array<i64: 64, 128>}, {pipeline_mode = #tpu.pipeline_mode<synchronous>, transform_indices = @transform_2, window_bounds = array<i64: 1, 128>}, {pipeline_mode = #tpu.pipeline_mode<synchronous>, transform_indices = @transform_3, window_bounds = array<i64: 128, 128>}, {pipeline_mode = #tpu.pipeline_mode<synchronous>, transform_indices = @transform_4, window_bounds = array<i64: 1, 128>}, {transform_indices = @transform_5, window_bounds = array<i64: 256, 128>}]} {
    %c0 = arith.constant 0 : index
    %c0_0 = arith.constant 0 : index
    %0 = vector.load %arg1[%c0, %c0_0] : memref<256x64xbf16, #tpu.memory_space<vmem>>, vector<256x64xbf16>
    %c0_1 = arith.constant 0 : index
    %c0_2 = arith.constant 0 : index
    %1 = vector.load %arg2[%c0_1, %c0_2] : memref<64x128xbf16, #tpu.memory_space<vmem>>, vector<64x128xbf16>
    %cst = arith.constant dense<0.000000e+00> : vector<256x128xf32>
    %2 = tpu.matmul %0, %1, %cst {dimension_numbers = #tpu.dot_dimension_numbers<[1], [0], [0], [1], [0, 0, 1, 1], [], []>} : vector<256x64xbf16>, vector<64x128xbf16>, vector<256x128xf32> -> vector<256x128xf32>
    %c0_3 = arith.constant 0 : index
    %c0_4 = arith.constant 0 : index
    %3 = vector.load %arg3[%c0_3, %c0_4] : memref<1x128xf32, #tpu.memory_space<vmem>>, vector<1x128xf32>
    %4 = vector.broadcast %3 : vector<1x128xf32> to vector<256x128xf32>
    %5 = arith.addf %2, %4 : vector<256x128xf32>
    %6 = arith.negf %5 : vector<256x128xf32>
    %7 = math.exp %6 : vector<256x128xf32>
    %cst_5 = arith.constant 1.000000e+00 : f32
    %8 = vector.broadcast %cst_5 : f32 to vector<256x128xf32>
    %9 = arith.addf %8, %7 : vector<256x128xf32>
    %10 = arith.divf %8, %9 : vector<256x128xf32>
    %11 = arith.truncf %10 : vector<256x128xf32> to vector<256x128xbf16>
    %c0_6 = arith.constant 0 : index
    %c0_7 = arith.constant 0 : index
    %12 = vector.load %arg4[%c0_6, %c0_7] : memref<128x128xbf16, #tpu.memory_space<vmem>>, vector<128x128xbf16>
    %cst_8 = arith.constant dense<0.000000e+00> : vector<256x128xf32>
    %13 = tpu.matmul %11, %12, %cst_8 {dimension_numbers = #tpu.dot_dimension_numbers<[1], [0], [0], [1], [0, 0, 1, 1], [], []>} : vector<256x128xbf16>, vector<128x128xbf16>, vector<256x128xf32> -> vector<256x128xf32>
    %c0_9 = arith.constant 0 : index
    %c0_10 = arith.constant 0 : index
    %14 = vector.load %arg5[%c0_9, %c0_10] : memref<1x128xf32, #tpu.memory_space<vmem>>, vector<1x128xf32>
    %15 = vector.broadcast %14 : vector<1x128xf32> to vector<256x128xf32>
    %16 = arith.addf %13, %15 : vector<256x128xf32>
    %c0_11 = arith.constant 0 : index
    %c0_12 = arith.constant 0 : index
    %17 = vector.load %arg6[%c0_11, %c0_12] : memref<256x128xf32, #tpu.memory_space<vmem>>, vector<256x128xf32>
    tpu.vector_store %arg6[%c0_11, %c0_12], %16 {strides = array<i32>} : memref<256x128xf32, #tpu.memory_space<vmem>>, vector<256x128xf32>,
    return
  }
  func.func @transform_0(%arg0: i32) -> (i32, i32) {
    %c0_i32 = arith.constant 0 : i32
    %c0_i32_0 = arith.constant 0 : i32
    return %arg0, %c0_i32 : i32, i32
  }
  func.func @transform_1(%arg0: i32) -> (i32, i32) {
    %c0_i32 = arith.constant 0 : i32
    %c0_i32_0 = arith.constant 0 : i32
    %c0_i32_1 = arith.constant 0 : i32
    return %c0_i32, %c0_i32_0 : i32, i32
  }
  func.func @transform_2(%arg0: i32) -> (i32, i32) {
    %c0_i32 = arith.constant 0 : i32
    %c0_i32_0 = arith.constant 0 : i32
    %c0_i32_1 = arith.constant 0 : i32
    return %c0_i32, %c0_i32_0 : i32, i32
  }
  func.func @transform_3(%arg0: i32) -> (i32, i32) {
    %c0_i32 = arith.constant 0 : i32
    %c0_i32_0 = arith.constant 0 : i32
    %c0_i32_1 = arith.constant 0 : i32
    return %c0_i32, %c0_i32_0 : i32, i32
  }
  func.func @transform_4(%arg0: i32) -> (i32, i32) {
    %c0_i32 = arith.constant 0 : i32
    %c0_i32_0 = arith.constant 0 : i32
    %c0_i32_1 = arith.constant 0 : i32
    return %c0_i32, %c0_i32_0 : i32, i32
  }
  func.func @transform_5(%arg0: i32) -> (i32, i32) {
    %c0_i32 = arith.constant 0 : i32
    %c0_i32_0 = arith.constant 0 : i32
    return %arg0, %c0_i32 : i32, i32
  }
}

</mosaic_0001>

<llo_original>
// kernel: forward.1
$region0: #{forward.1}
  #allocation0 [shape = 'u32[]', space=smem, size = 0x4, offset = 0x4, fixed_abs, tag = 'smem constant byte address 0x4 - core index']
  #allocation1 [shape = 'u32[144,128]{1,0:T(1,128)}', space=vmem, size = 0x12000, scoped, tag = 'internal scratch']
  %s0 = inlined_call_operand.vmem [shape: bf16[256,64], index: 0, kind: input, shape index: {}]
  %s1 = inlined_call_operand.vmem [shape: bf16[64,128], index: 1, kind: input, shape index: {}]
  %s2 = inlined_call_operand.vmem [shape: f32[1,128], index: 2, kind: input, shape index: {}, may-alias: {2,4}]
  %s3 = inlined_call_operand.vmem [shape: bf16[128,128], index: 3, kind: input, shape index: {}]
  %s4 = inlined_call_operand.vmem [shape: f32[1,128], index: 4, kind: input, shape index: {}, may-alias: {2,4}]
  %s5 = inlined_call_operand.vmem [shape: f32[256,128], index: 5, kind: output, shape index: {}]
  %s6 = sld [smem:[#allocation0]]
  $region30: #{forward.1} parent=0
    _
  %s8 = ssub.s32 1, %s6
  %s9 = scalar_select 0, %s8, %s6
  // Predicated region
  $region2: #{forward.1} parent=0 // pred_check
    _
  $region3: #{forward.1} parent=0 // pred_check_branch
    %11 = sbr.rel (0) target = $region5
  $region4: #{forward.1} parent=0 // pred_region
    _
  $region5: #{forward.1} parent=0 // pred_fallthru
    _
  // Predicated region
  $region6: #{forward.1} parent=0 // pred_check
    _
  $region7: #{forward.1} parent=0 // pred_check_branch
    %13 = sbr.rel (0) target = $region9
  $region8: #{forward.1} parent=0 // pred_region
    _
  $region9: #{forward.1} parent=0 // pred_fallthru
    _
  // Predicated region
  $region10: #{forward.1} parent=0 // pred_check
    _
  $region11: #{forward.1} parent=0 // pred_check_branch
    %15 = sbr.rel (0) target = $region13
  $region12: #{forward.1} parent=0 // pred_region
    _
  $region13: #{forward.1} parent=0 // pred_fallthru
    _
  // Predicated region
  $region14: #{forward.1} parent=0 // pred_check
    _
  $region15: #{forward.1} parent=0 // pred_check_branch
    %17 = sbr.rel (0) target = $region17
  $region16: #{forward.1} parent=0 // pred_region
    _
  $region17: #{forward.1} parent=0 // pred_fallthru
    _
  // Predicated region
  $region18: #{forward.1} parent=0 // pred_check
    _
  $region19: #{forward.1} parent=0 // pred_check_branch
    %19 = sbr.rel (0) target = $region21
  $region20: #{forward.1} parent=0 // pred_region
    _
  $region21: #{forward.1} parent=0 // pred_fallthru
    _
  %v21 = vld [vmem:[%s0] sm:$0xf]
  %v22 = vld [vmem:[%s0 + $0x4] sm:$0xf]
  %v23 = vld [vmem:[%s0 + $0x8] sm:$0xf]
  %v24 = vld [vmem:[%s0 + $0xc] sm:$0xf]
  %v25 = vld [vmem:[%s0 + $0x10] sm:$0xf]
  %v26 = vld [vmem:[%s0 + $0x14] sm:$0xf]
  %v27 = vld [vmem:[%s0 + $0x18] sm:$0xf]
  %v28 = vld [vmem:[%s0 + $0x1c] sm:$0xf]
  %v29 = vld [vmem:[%s0 + $0x20] sm:$0xf]
  %v30 = vld [vmem:[%s0 + $0x24] sm:$0xf]
  %v31 = vld [vmem:[%s0 + $0x28] sm:$0xf]
  %v32 = vld [vmem:[%s0 + $0x2c] sm:$0xf]
  %v33 = vld [vmem:[%s0 + $0x30] sm:$0xf]
  %v34 = vld [vmem:[%s0 + $0x34] sm:$0xf]
  %v35 = vld [vmem:[%s0 + $0x38] sm:$0xf]
  %v36 = vld [vmem:[%s0 + $0x3c] sm:$0xf]
  %v37 = vld [vmem:[%s0 + $0x40] sm:$0xf]
  %v38 = vld [vmem:[%s0 + $0x44] sm:$0xf]
  %v39 = vld [vmem:[%s0 + $0x48] sm:$0xf]
  %v40 = vld [vmem:[%s0 + $0x4c] sm:$0xf]
  %v41 = vld [vmem:[%s0 + $0x50] sm:$0xf]
  %v42 = vld [vmem:[%s0 + $0x54] sm:$0xf]
  %v43 = vld [vmem:[%s0 + $0x58] sm:$0xf]
  %v44 = vld [vmem:[%s0 + $0x5c] sm:$0xf]
  %v45 = vld [vmem:[%s0 + $0x60] sm:$0xf]
  %v46 = vld [vmem:[%s0 + $0x64] sm:$0xf]
  %v47 = vld [vmem:[%s0 + $0x68] sm:$0xf]
  %v48 = vld [vmem:[%s0 + $0x6c] sm:$0xf]
  %v49 = vld [vmem:[%s0 + $0x70] sm:$0xf]
  %v50 = vld [vmem:[%s0 + $0x74] sm:$0xf]
  %v51 = vld [vmem:[%s0 + $0x78] sm:$0xf]
  %v52 = vld [vmem:[%s0 + $0x7c] sm:$0xf]
  %v53 = vld [vmem:[%s1] sm:$0xf]
  %v54 = vld [vmem:[%s1 + $0x4] sm:$0xf]
  %v55 = vld [vmem:[%s1 + $0x8] sm:$0xf]
  %v56 = vld [vmem:[%s1 + $0xc] sm:$0xf]
  %v57 = vld [vmem:[%s1 + $0x10] sm:$0xf]
  %v58 = vld [vmem:[%s1 + $0x14] sm:$0xf]
  %v59 = vld [vmem:[%s1 + $0x18] sm:$0xf]
  %v60 = vld [vmem:[%s1 + $0x1c] sm:$0xf]
  %v61 = vld [vmem:[%s2] sm:$0x1]
  %v63 = vlaneseq
  %v64 = vshrl.u32 %v63, 7
  %v65 = vsub.s32 0, %v64
  %v66 = vrot.slane %v61, %v65
  %v100 = vunpack.c.l.b16 %v21
  %v101 = vunpack.c.l.b16 %v22
  %v102 = vunpack.c.l.b16 %v23
  %v103 = vunpack.c.l.b16 %v24
  %v104 = vunpack.c.l.b16 %v25
  %v105 = vunpack.c.l.b16 %v26
  %v106 = vunpack.c.l.b16 %v27
  %v107 = vunpack.c.l.b16 %v28
  %v108 = vunpack.c.l.b16 %v29
  %v109 = vunpack.c.l.b16 %v30
  %v110 = vunpack.c.l.b16 %v31
  %v111 = vunpack.c.l.b16 %v32
  %v112 = vunpack.c.l.b16 %v33
  %v113 = vunpack.c.l.b16 %v34
  %v114 = vunpack.c.l.b16 %v35
  %v115 = vunpack.c.l.b16 %v36
  %v116 = vunpack.c.l.b16 %v37
  %v117 = vunpack.c.l.b16 %v38
  %v118 = vunpack.c.l.b16 %v39
  %v119 = vunpack.c.l.b16 %v40
  %v120 = vunpack.c.l.b16 %v41
  %v121 = vunpack.c.l.b16 %v42
  %v122 = vunpack.c.l.b16 %v43
  %v123 = vunpack.c.l.b16 %v44
  %v124 = vunpack.c.l.b16 %v45
  %v125 = vunpack.c.l.b16 %v46
  %v126 = vunpack.c.l.b16 %v47
  %v127 = vunpack.c.l.b16 %v48
  %v128 = vunpack.c.l.b16 %v49
  %v129 = vunpack.c.l.b16 %v50
  %v130 = vunpack.c.l.b16 %v51
  %v131 = vunpack.c.l.b16 %v52
  %v132 = vpack.c.b16 %v101, %v100
  %v133 = vpack.c.b16 %v103, %v102
  %v134 = vpack.c.b16 %v105, %v104
  %v135 = vpack.c.b16 %v107, %v106
  %v136 = vpack.c.b16 %v109, %v108
  %v137 = vpack.c.b16 %v111, %v110
  %v138 = vpack.c.b16 %v113, %v112
  %v139 = vpack.c.b16 %v115, %v114
  %v140 = vpack.c.b16 %v117, %v116
  %v141 = vpack.c.b16 %v119, %v118
  %v142 = vpack.c.b16 %v121, %v120
  %v143 = vpack.c.b16 %v123, %v122
  %v144 = vpack.c.b16 %v125, %v124
  %v145 = vpack.c.b16 %v127, %v126
  %v146 = vpack.c.b16 %v129, %v128
  %v147 = vpack.c.b16 %v131, %v130
  %v156 = vunpack.c.l.b16 %v53
  %v157 = vunpack.c.l.b16 %v54
  %v158 = vunpack.c.l.b16 %v55
  %v159 = vunpack.c.l.b16 %v56
  %v160 = vunpack.c.l.b16 %v57
  %v161 = vunpack.c.l.b16 %v58
  %v162 = vunpack.c.l.b16 %v59
  %v163 = vunpack.c.l.b16 %v60
  %v164 = vpack.c.b16 %v157, %v156
  %v165 = vpack.c.b16 %v159, %v158
  %v166 = vpack.c.b16 %v161, %v160
  %v167 = vpack.c.b16 %v163, %v162
  %vm172 = vcmask 523264
  %v174 = vsel %vm172, %v132, 0
  %v177 = vsel %vm172, %v133, 0
  %v180 = vsel %vm172, %v134, 0
  %v183 = vsel %vm172, %v135, 0
  %v186 = vsel %vm172, %v136, 0
  %v189 = vsel %vm172, %v137, 0
  %v192 = vsel %vm172, %v138, 0
  %v195 = vsel %vm172, %v139, 0
  %v198 = vsel %vm172, %v140, 0
  %v201 = vsel %vm172, %v141, 0
  %v204 = vsel %vm172, %v142, 0
  %v207 = vsel %vm172, %v143, 0
  %v210 = vsel %vm172, %v144, 0
  %v213 = vsel %vm172, %v145, 0
  %v216 = vsel %vm172, %v146, 0
  %v219 = vsel %vm172, %v147, 0
  %221 = vmatprep.subr.bf16.mxu0 0
  %222 = vmatpush1.bf16.msra.mxu0 %v164
  %223 = vmatprep.subr.bf16.mxu0 0
  %224 = vmatpush1.bf16.msra.mxu0 %v165
  %225 = vmatprep.subr.bf16.mxu0 0
  %226 = vmatpush1.bf16.msra.mxu0 %v166
  %227 = vmatprep.subr.bf16.mxu0 0
  %228 = vmatpush1.bf16.msra.mxu0 %v167
  %229 = vmatprep.subr.bf16.mxu0 0
  %230 = vmatpush1.bf16.msra.mxu0 0
  %231 = vmatprep.subr.bf16.mxu0 0
  %232 = vmatpush1.bf16.msra.mxu0 0
  %233 = vmatprep.subr.bf16.mxu0 0
  %234 = vmatpush1.bf16.msra.mxu0 0
  %235 = vmatprep.subr.bf16.mxu0 0
  %236 = vmatpush1.bf16.msra.mxu0 0
  %237 = vmatprep.subr.bf16.mxu0 0
  %238 = vmatpush1.bf16.msra.mxu0 0
  %239 = vmatprep.subr.bf16.mxu0 0
  %240 = vmatpush1.bf16.msra.mxu0 0
  %241 = vmatprep.subr.bf16.mxu0 0
  %242 = vmatpush1.bf16.msra.mxu0 0
  %243 = vmatprep.subr.bf16.mxu0 0
  %244 = vmatpush1.bf16.msra.mxu0 0
  %245 = vmatprep.subr.bf16.mxu0 0
  %246 = vmatpush1.bf16.msra.mxu0 0
  %247 = vmatprep.subr.bf16.mxu0 0
  %248 = vmatpush1.bf16.msra.mxu0 0
  %249 = vmatprep.subr.bf16.mxu0 0
  %250 = vmatpush1.bf16.msra.mxu0 0
  %251 = vmatprep.subr.bf16.mxu0 0
  %252 = vmatpush1.bf16.msra.mxu0 0
  %253 = vmatprep.mubr.bf16.mxu0 0
  %254 = vmatmul.mubr.bf16.gmra.mrb[0].mxu0 %v174
  %v255 = vpop.f32.mrb[0].mxu0
  %v256 = vadd.f32 %v66, %v255
  %v257 = vpop.f32.mrb[0].mxu0
  %v258 = vpop.f32.mrb[0].mxu0
  %v259 = vadd.f32 %v66, %v258
  %v260 = vpop.f32.mrb[0].mxu0
  %261 = vmatprep.mubr.bf16.mxu0 0
  %262 = vmatmul.mubr.bf16.gmra.mrb[0].mxu0 %v177
  %v263 = vpop.f32.mrb[0].mxu0
  %v264 = vadd.f32 %v66, %v263
  %v265 = vpop.f32.mrb[0].mxu0
  %v266 = vpop.f32.mrb[0].mxu0
  %v267 = vadd.f32 %v66, %v266
  %v268 = vpop.f32.mrb[0].mxu0
  %269 = vmatprep.mubr.bf16.mxu0 0
  %270 = vmatmul.mubr.bf16.gmra.mrb[0].mxu0 %v180
  %v271 = vpop.f32.mrb[0].mxu0
  %v272 = vadd.f32 %v66, %v271
  %v273 = vpop.f32.mrb[0].mxu0
  %v274 = vpop.f32.mrb[0].mxu0
  %v275 = vadd.f32 %v66, %v274
  %v276 = vpop.f32.mrb[0].mxu0
  %277 = vmatprep.mubr.bf16.mxu0 0
  %278 = vmatmul.mubr.bf16.gmra.mrb[0].mxu0 %v183
  %v279 = vpop.f32.mrb[0].mxu0
  %v280 = vadd.f32 %v66, %v279
  %v281 = vpop.f32.mrb[0].mxu0
  %v282 = vpop.f32.mrb[0].mxu0
  %v283 = vadd.f32 %v66, %v282
  %v284 = vpop.f32.mrb[0].mxu0
  %285 = vmatprep.mubr.bf16.mxu0 0
  %286 = vmatmul.mubr.bf16.gmra.mrb[0].mxu0 %v186
  %v287 = vpop.f32.mrb[0].mxu0
  %v288 = vadd.f32 %v66, %v287
  %v289 = vpop.f32.mrb[0].mxu0
  %v290 = vpop.f32.mrb[0].mxu0
  %v291 = vadd.f32 %v66, %v290
  %v292 = vpop.f32.mrb[0].mxu0
  %293 = vmatprep.mubr.bf16.mxu0 0
  %294 = vmatmul.mubr.bf16.gmra.mrb[0].mxu0 %v189
  %v295 = vpop.f32.mrb[0].mxu0
  %v296 = vadd.f32 %v66, %v295
  %v297 = vpop.f32.mrb[0].mxu0
  %v298 = vpop.f32.mrb[0].mxu0
  %v299 = vadd.f32 %v66, %v298
  %v300 = vpop.f32.mrb[0].mxu0
  %301 = vmatprep.mubr.bf16.mxu0 0
  %302 = vmatmul.mubr.bf16.gmra.mrb[0].mxu0 %v192
  %v303 = vpop.f32.mrb[0].mxu0
  %v304 = vadd.f32 %v66, %v303
  %v305 = vpop.f32.mrb[0].mxu0
  %v306 = vpop.f32.mrb[0].mxu0
  %v307 = vadd.f32 %v66, %v306
  %v308 = vpop.f32.mrb[0].mxu0
  %309 = vmatprep.mubr.bf16.mxu0 0
  %310 = vmatmul.mubr.bf16.gmra.mrb[0].mxu0 %v195
  %v311 = vpop.f32.mrb[0].mxu0
  %v312 = vadd.f32 %v66, %v311
  %v313 = vpop.f32.mrb[0].mxu0
  %v314 = vpop.f32.mrb[0].mxu0
  %v315 = vadd.f32 %v66, %v314
  %v316 = vpop.f32.mrb[0].mxu0
  %317 = vmatprep.mubr.bf16.mxu0 0
  %318 = vmatmul.mubr.bf16.gmra.mrb[0].mxu0 %v198
  %v319 = vpop.f32.mrb[0].mxu0
  %v320 = vadd.f32 %v66, %v319
  %v321 = vpop.f32.mrb[0].mxu0
  %v322 = vpop.f32.mrb[0].mxu0
  %v323 = vadd.f32 %v66, %v322
  %v324 = vpop.f32.mrb[0].mxu0
  %325 = vmatprep.mubr.bf16.mxu0 0
  %326 = vmatmul.mubr.bf16.gmra.mrb[0].mxu0 %v201
  %v327 = vpop.f32.mrb[0].mxu0
  %v328 = vadd.f32 %v66, %v327
  %v329 = vpop.f32.mrb[0].mxu0
  %v330 = vpop.f32.mrb[0].mxu0
  %v331 = vadd.f32 %v66, %v330
  %v332 = vpop.f32.mrb[0].mxu0
  %333 = vmatprep.mubr.bf16.mxu0 0
  %334 = vmatmul.mubr.bf16.gmra.mrb[0].mxu0 %v204
  %v335 = vpop.f32.mrb[0].mxu0
  %v336 = vadd.f32 %v66, %v335
  %v337 = vpop.f32.mrb[0].mxu0
  %v338 = vpop.f32.mrb[0].mxu0
  %v339 = vadd.f32 %v66, %v338
  %v340 = vpop.f32.mrb[0].mxu0
  %341 = vmatprep.mubr.bf16.mxu0 0
  %342 = vmatmul.mubr.bf16.gmra.mrb[0].mxu0 %v207
  %v343 = vpop.f32.mrb[0].mxu0
  %v344 = vadd.f32 %v66, %v343
  %v345 = vpop.f32.mrb[0].mxu0
  %v346 = vpop.f32.mrb[0].mxu0
  %v347 = vadd.f32 %v66, %v346
  %v348 = vpop.f32.mrb[0].mxu0
  %349 = vmatprep.mubr.bf16.mxu0 0
  %350 = vmatmul.mubr.bf16.gmra.mrb[0].mxu0 %v210
  %v351 = vpop.f32.mrb[0].mxu0
  %v352 = vadd.f32 %v66, %v351
  %v353 = vpop.f32.mrb[0].mxu0
  %v354 = vpop.f32.mrb[0].mxu0
  %v355 = vadd.f32 %v66, %v354
  %v356 = vpop.f32.mrb[0].mxu0
  %357 = vmatprep.mubr.bf16.mxu0 0
  %358 = vmatmul.mubr.bf16.gmra.mrb[0].mxu0 %v213
  %v359 = vpop.f32.mrb[0].mxu0
  %v360 = vadd.f32 %v66, %v359
  %v361 = vpop.f32.mrb[0].mxu0
  %v362 = vpop.f32.mrb[0].mxu0
  %v363 = vadd.f32 %v66, %v362
  %v364 = vpop.f32.mrb[0].mxu0
  %365 = vmatprep.mubr.bf16.mxu0 0
  %366 = vmatmul.mubr.bf16.gmra.mrb[0].mxu0 %v216
  %v367 = vpop.f32.mrb[0].mxu0
  %v368 = vadd.f32 %v66, %v367
  %v369 = vpop.f32.mrb[0].mxu0
  %v370 = vpop.f32.mrb[0].mxu0
  %v371 = vadd.f32 %v66, %v370
  %v372 = vpop.f32.mrb[0].mxu0
  %373 = vmatprep.mubr.bf16.mxu0 0
  %374 = vmatmul.mubr.bf16.gmra.mrb[0].mxu0 %v219
  %v375 = vpop.f32.mrb[0].mxu0
  %v376 = vadd.f32 %v66, %v375
  %v377 = vpop.f32.mrb[0].mxu0
  %v378 = vpop.f32.mrb[0].mxu0
  %v379 = vadd.f32 %v66, %v378
  %v380 = vpop.f32.mrb[0].mxu0
  %381 = vdwg.mxu0
  %v382 = vxor.u32 %v256, 2147483648
  %v383 = vxor.u32 %v259, 2147483648
  %v384 = vxor.u32 %v264, 2147483648
  %v385 = vxor.u32 %v267, 2147483648
  %v386 = vxor.u32 %v272, 2147483648
  %v387 = vxor.u32 %v275, 2147483648
  %v388 = vxor.u32 %v280, 2147483648
  %v389 = vxor.u32 %v283, 2147483648
  %v390 = vxor.u32 %v288, 2147483648
  %v391 = vxor.u32 %v291, 2147483648
  %v392 = vxor.u32 %v296, 2147483648
  %v393 = vxor.u32 %v299, 2147483648
  %v394 = vxor.u32 %v304, 2147483648
  %v395 = vxor.u32 %v307, 2147483648
  %v396 = vxor.u32 %v312, 2147483648
  %v397 = vxor.u32 %v315, 2147483648
  %v398 = vxor.u32 %v320, 2147483648
  %v399 = vxor.u32 %v323, 2147483648
  %v400 = vxor.u32 %v328, 2147483648
  %v401 = vxor.u32 %v331, 2147483648
  %v402 = vxor.u32 %v336, 2147483648
  %v403 = vxor.u32 %v339, 2147483648
  %v404 = vxor.u32 %v344, 2147483648
  %v405 = vxor.u32 %v347, 2147483648
  %v406 = vxor.u32 %v352, 2147483648
  %v407 = vxor.u32 %v355, 2147483648
  %v408 = vxor.u32 %v360, 2147483648
  %v409 = vxor.u32 %v363, 2147483648
  %v410 = vxor.u32 %v368, 2147483648
  %v411 = vxor.u32 %v371, 2147483648
  %v412 = vxor.u32 %v376, 2147483648
  %v413 = vxor.u32 %v379, 2147483648
  %v414 = vmul.f32 %v382, 1.442695
  %v415 = vpow.pop %v414
  %v416 = vmul.f32 %v383, 1.442695
  %v417 = vpow.pop %v416
  %v418 = vmul.f32 %v384, 1.442695
  %v419 = vpow.pop %v418
  %v420 = vmul.f32 %v385, 1.442695
  %v421 = vpow.pop %v420
  %v422 = vmul.f32 %v386, 1.442695
  %v423 = vpow.pop %v422
  %v424 = vmul.f32 %v387, 1.442695
  %v425 = vpow.pop %v424
  %v426 = vmul.f32 %v388, 1.442695
  %v427 = vpow.pop %v426
  %v428 = vmul.f32 %v389, 1.442695
  %v429 = vpow.pop %v428
  %v430 = vmul.f32 %v390, 1.442695
  %v431 = vpow.pop %v430
  %v432 = vmul.f32 %v391, 1.442695
  %v433 = vpow.pop %v432
  %v434 = vmul.f32 %v392, 1.442695
  %v435 = vpow.pop %v434
  %v436 = vmul.f32 %v393, 1.442695
  %v437 = vpow.pop %v436
  %v438 = vmul.f32 %v394, 1.442695
  %v439 = vpow.pop %v438
  %v440 = vmul.f32 %v395, 1.442695
  %v441 = vpow.pop %v440
  %v442 = vmul.f32 %v396, 1.442695
  %v443 = vpow.pop %v442
  %v444 = vmul.f32 %v397, 1.442695
  %v445 = vpow.pop %v444
  %v446 = vmul.f32 %v398, 1.442695
  %v447 = vpow.pop %v446
  %v448 = vmul.f32 %v399, 1.442695
  %v449 = vpow.pop %v448
  %v450 = vmul.f32 %v400, 1.442695
  %v451 = vpow.pop %v450
  %v452 = vmul.f32 %v401, 1.442695
  %v453 = vpow.pop %v452
  %v454 = vmul.f32 %v402, 1.442695
  %v455 = vpow.pop %v454
  %v456 = vmul.f32 %v403, 1.442695
  %v457 = vpow.pop %v456
  %v458 = vmul.f32 %v404, 1.442695
  %v459 = vpow.pop %v458
  %v460 = vmul.f32 %v405, 1.442695
  %v461 = vpow.pop %v460
  %v462 = vmul.f32 %v406, 1.442695
  %v463 = vpow.pop %v462
  %v464 = vmul.f32 %v407, 1.442695
  %v465 = vpow.pop %v464
  %v466 = vmul.f32 %v408, 1.442695
  %v467 = vpow.pop %v466
  %v468 = vmul.f32 %v409, 1.442695
  %v469 = vpow.pop %v468
  %v470 = vmul.f32 %v410, 1.442695
  %v471 = vpow.pop %v470
  %v472 = vmul.f32 %v411, 1.442695
  %v473 = vpow.pop %v472
  %v474 = vmul.f32 %v412, 1.442695
  %v475 = vpow.pop %v474
  %v476 = vmul.f32 %v413, 1.442695
  %v477 = vpow.pop %v476
  %v478 = vadd.f32 %v415, 1.0
  %v479 = vadd.f32 %v417, 1.0
  %v480 = vadd.f32 %v419, 1.0
  %v481 = vadd.f32 %v421, 1.0
  %v482 = vadd.f32 %v423, 1.0
  %v483 = vadd.f32 %v425, 1.0
  %v484 = vadd.f32 %v427, 1.0
  %v485 = vadd.f32 %v429, 1.0
  %v486 = vadd.f32 %v431, 1.0
  %v487 = vadd.f32 %v433, 1.0
  %v488 = vadd.f32 %v435, 1.0
  %v489 = vadd.f32 %v437, 1.0
  %v490 = vadd.f32 %v439, 1.0
  %v491 = vadd.f32 %v441, 1.0
  %v492 = vadd.f32 %v443, 1.0
  %v493 = vadd.f32 %v445, 1.0
  %v494 = vadd.f32 %v447, 1.0
  %v495 = vadd.f32 %v449, 1.0
  %v496 = vadd.f32 %v451, 1.0
  %v497 = vadd.f32 %v453, 1.0
  %v498 = vadd.f32 %v455, 1.0
  %v499 = vadd.f32 %v457, 1.0
  %v500 = vadd.f32 %v459, 1.0
  %v501 = vadd.f32 %v461, 1.0
  %v502 = vadd.f32 %v463, 1.0
  %v503 = vadd.f32 %v465, 1.0
  %v504 = vadd.f32 %v467, 1.0
  %v505 = vadd.f32 %v469, 1.0
  %v506 = vadd.f32 %v471, 1.0
  %v507 = vadd.f32 %v473, 1.0
  %v508 = vadd.f32 %v475, 1.0
  %v509 = vadd.f32 %v477, 1.0
  %v510 = vrcp.pop %v478
  %v511 = vmul.f32 1.0, %v510
  %v512 = vrcp.pop %v479
  %v513 = vmul.f32 1.0, %v512
  %v514 = vrcp.pop %v480
  %v515 = vmul.f32 1.0, %v514
  %v516 = vrcp.pop %v481
  %v517 = vmul.f32 1.0, %v516
  %v518 = vrcp.pop %v482
  %v519 = vmul.f32 1.0, %v518
  %v520 = vrcp.pop %v483
  %v521 = vmul.f32 1.0, %v520
  %v522 = vrcp.pop %v484
  %v523 = vmul.f32 1.0, %v522
  %v524 = vrcp.pop %v485
  %v525 = vmul.f32 1.0, %v524
  %v526 = vrcp.pop %v486
  %v527 = vmul.f32 1.0, %v526
  %v528 = vrcp.pop %v487
  %v529 = vmul.f32 1.0, %v528
  %v530 = vrcp.pop %v488
  %v531 = vmul.f32 1.0, %v530
  %v532 = vrcp.pop %v489
  %v533 = vmul.f32 1.0, %v532
  %v534 = vrcp.pop %v490
  %v535 = vmul.f32 1.0, %v534
  %v536 = vrcp.pop %v491
  %v537 = vmul.f32 1.0, %v536
  %v538 = vrcp.pop %v492
  %v539 = vmul.f32 1.0, %v538
  %v540 = vrcp.pop %v493
  %v541 = vmul.f32 1.0, %v540
  %v542 = vrcp.pop %v494
  %v543 = vmul.f32 1.0, %v542
  %v544 = vrcp.pop %v495
  %v545 = vmul.f32 1.0, %v544
  %v546 = vrcp.pop %v496
  %v547 = vmul.f32 1.0, %v546
  %v548 = vrcp.pop %v497
  %v549 = vmul.f32 1.0, %v548
  %v550 = vrcp.pop %v498
  %v551 = vmul.f32 1.0, %v550
  %v552 = vrcp.pop %v499
  %v553 = vmul.f32 1.0, %v552
  %v554 = vrcp.pop %v500
  %v555 = vmul.f32 1.0, %v554
  %v556 = vrcp.pop %v501
  %v557 = vmul.f32 1.0, %v556
  %v558 = vrcp.pop %v502
  %v559 = vmul.f32 1.0, %v558
  %v560 = vrcp.pop %v503
  %v561 = vmul.f32 1.0, %v560
  %v562 = vrcp.pop %v504
  %v563 = vmul.f32 1.0, %v562
  %v564 = vrcp.pop %v505
  %v565 = vmul.f32 1.0, %v564
  %v566 = vrcp.pop %v506
  %v567 = vmul.f32 1.0, %v566
  %v568 = vrcp.pop %v507
  %v569 = vmul.f32 1.0, %v568
  %v570 = vrcp.pop %v508
  %v571 = vmul.f32 1.0, %v570
  %v572 = vrcp.pop %v509
  %v573 = vmul.f32 1.0, %v572
  %v574 = vpack.c.bf16 %v513, %v511
  %v575 = vpack.c.bf16 %v517, %v515
  %v576 = vpack.c.bf16 %v521, %v519
  %v577 = vpack.c.bf16 %v525, %v523
  %v578 = vpack.c.bf16 %v529, %v527
  %v579 = vpack.c.bf16 %v533, %v531
  %v580 = vpack.c.bf16 %v537, %v535
  %v581 = vpack.c.bf16 %v541, %v539
  %v582 = vpack.c.bf16 %v545, %v543
  %v583 = vpack.c.bf16 %v549, %v547
  %v584 = vpack.c.bf16 %v553, %v551
  %v585 = vpack.c.bf16 %v557, %v555
  %v586 = vpack.c.bf16 %v561, %v559
  %v587 = vpack.c.bf16 %v565, %v563
  %v588 = vpack.c.bf16 %v569, %v567
  %v589 = vpack.c.bf16 %v573, %v571
  %v590 = vld [vmem:[%s3] sm:$0xf]
  %v591 = vld [vmem:[%s3 + $0x4] sm:$0xf]
  %v592 = vld [vmem:[%s3 + $0x8] sm:$0xf]
  %v593 = vld [vmem:[%s3 + $0xc] sm:$0xf]
  %v594 = vld [vmem:[%s3 + $0x10] sm:$0xf]
  %v595 = vld [vmem:[%s3 + $0x14] sm:$0xf]
  %v596 = vld [vmem:[%s3 + $0x18] sm:$0xf]
  %v597 = vld [vmem:[%s3 + $0x1c] sm:$0xf]
  %v598 = vld [vmem:[%s3 + $0x20] sm:$0xf]
  %v599 = vld [vmem:[%s3 + $0x24] sm:$0xf]
  %v600 = vld [vmem:[%s3 + $0x28] sm:$0xf]
  %v601 = vld [vmem:[%s3 + $0x2c] sm:$0xf]
  %v602 = vld [vmem:[%s3 + $0x30] sm:$0xf]
  %v603 = vld [vmem:[%s3 + $0x34] sm:$0xf]
  %v604 = vld [vmem:[%s3 + $0x38] sm:$0xf]
  %v605 = vld [vmem:[%s3 + $0x3c] sm:$0xf]
  %v606 = vld [vmem:[%s4] sm:$0x1]
  %v608 = vlaneseq
  %v609 = vshrl.u32 %v608, 7
  %v610 = vsub.s32 0, %v609
  %v611 = vrot.slane %v606, %v610
  %v629 = vunpack.c.l.b16 %v590
  %v630 = vunpack.c.l.b16 %v591
  %v631 = vunpack.c.l.b16 %v592
  %v632 = vunpack.c.l.b16 %v593
  %v633 = vunpack.c.l.b16 %v594
  %v634 = vunpack.c.l.b16 %v595
  %v635 = vunpack.c.l.b16 %v596
  %v636 = vunpack.c.l.b16 %v597
  %v637 = vunpack.c.l.b16 %v598
  %v638 = vunpack.c.l.b16 %v599
  %v639 = vunpack.c.l.b16 %v600
  %v640 = vunpack.c.l.b16 %v601
  %v641 = vunpack.c.l.b16 %v602
  %v642 = vunpack.c.l.b16 %v603
  %v643 = vunpack.c.l.b16 %v604
  %v644 = vunpack.c.l.b16 %v605
  %v645 = vpack.c.b16 %v630, %v629
  %v646 = vpack.c.b16 %v632, %v631
  %v647 = vpack.c.b16 %v634, %v633
  %v648 = vpack.c.b16 %v636, %v635
  %v649 = vpack.c.b16 %v638, %v637
  %v650 = vpack.c.b16 %v640, %v639
  %v651 = vpack.c.b16 %v642, %v641
  %v652 = vpack.c.b16 %v644, %v643
  %661 = vmatprep.subr.bf16.mxu0 0
  %662 = vmatpush1.bf16.msra.mxu0 %v645
  %663 = vmatprep.subr.bf16.mxu0 0
  %664 = vmatpush1.bf16.msra.mxu0 %v646
  %665 = vmatprep.subr.bf16.mxu0 0
  %666 = vmatpush1.bf16.msra.mxu0 %v647
  %667 = vmatprep.subr.bf16.mxu0 0
  %668 = vmatpush1.bf16.msra.mxu0 %v648
  %669 = vmatprep.subr.bf16.mxu0 0
  %670 = vmatpush1.bf16.msra.mxu0 %v649
  %671 = vmatprep.subr.bf16.mxu0 0
  %672 = vmatpush1.bf16.msra.mxu0 %v650
  %673 = vmatprep.subr.bf16.mxu0 0
  %674 = vmatpush1.bf16.msra.mxu0 %v651
  %675 = vmatprep.subr.bf16.mxu0 0
  %676 = vmatpush1.bf16.msra.mxu0 %v652
  %677 = vmatprep.subr.bf16.mxu0 0
  %678 = vmatpush1.bf16.msra.mxu0 0
  %679 = vmatprep.subr.bf16.mxu0 0
  %680 = vmatpush1.bf16.msra.mxu0 0
  %681 = vmatprep.subr.bf16.mxu0 0
  %682 = vmatpush1.bf16.msra.mxu0 0
  %683 = vmatprep.subr.bf16.mxu0 0
  %684 = vmatpush1.bf16.msra.mxu0 0
  %685 = vmatprep.subr.bf16.mxu0 0
  %686 = vmatpush1.bf16.msra.mxu0 0
  %687 = vmatprep.subr.bf16.mxu0 0
  %688 = vmatpush1.bf16.msra.mxu0 0
  %689 = vmatprep.subr.bf16.mxu0 0
  %690 = vmatpush1.bf16.msra.mxu0 0
  %691 = vmatprep.subr.bf16.mxu0 0
  %692 = vmatpush1.bf16.msra.mxu0 0
  %693 = vmatprep.mubr.bf16.mxu0 0
  %694 = vmatmul.mubr.bf16.gmra.mrb[0].mxu0 %v574
  %v695 = vpop.f32.mrb[0].mxu0
  %v696 = vadd.f32 %v611, %v695
  %v697 = vpop.f32.mrb[0].mxu0
  %v698 = vpop.f32.mrb[0].mxu0
  %v699 = vadd.f32 %v611, %v698
  %v700 = vpop.f32.mrb[0].mxu0
  %701 = vmatprep.mubr.bf16.mxu0 0
  %702 = vmatmul.mubr.bf16.gmra.mrb[0].mxu0 %v575
  %v703 = vpop.f32.mrb[0].mxu0
  %v704 = vadd.f32 %v611, %v703
  %v705 = vpop.f32.mrb[0].mxu0
  %v706 = vpop.f32.mrb[0].mxu0
  %v707 = vadd.f32 %v611, %v706
  %v708 = vpop.f32.mrb[0].mxu0
  %709 = vmatprep.mubr.bf16.mxu0 0
  %710 = vmatmul.mubr.bf16.gmra.mrb[0].mxu0 %v576
  %v711 = vpop.f32.mrb[0].mxu0
  %v712 = vadd.f32 %v611, %v711
  %v713 = vpop.f32.mrb[0].mxu0
  %v714 = vpop.f32.mrb[0].mxu0
  %v715 = vadd.f32 %v611, %v714
  %v716 = vpop.f32.mrb[0].mxu0
  %717 = vmatprep.mubr.bf16.mxu0 0
  %718 = vmatmul.mubr.bf16.gmra.mrb[0].mxu0 %v577
  %v719 = vpop.f32.mrb[0].mxu0
  %v720 = vadd.f32 %v611, %v719
  %v721 = vpop.f32.mrb[0].mxu0
  %v722 = vpop.f32.mrb[0].mxu0
  %v723 = vadd.f32 %v611, %v722
  %v724 = vpop.f32.mrb[0].mxu0
  %725 = vmatprep.mubr.bf16.mxu0 0
  %726 = vmatmul.mubr.bf16.gmra.mrb[0].mxu0 %v578
  %v727 = vpop.f32.mrb[0].mxu0
  %v728 = vadd.f32 %v611, %v727
  %v729 = vpop.f32.mrb[0].mxu0
  %v730 = vpop.f32.mrb[0].mxu0
  %v731 = vadd.f32 %v611, %v730
  %v732 = vpop.f32.mrb[0].mxu0
  %733 = vmatprep.mubr.bf16.mxu0 0
  %734 = vmatmul.mubr.bf16.gmra.mrb[0].mxu0 %v579
  %v735 = vpop.f32.mrb[0].mxu0
  %v736 = vadd.f32 %v611, %v735
  %v737 = vpop.f32.mrb[0].mxu0
  %v738 = vpop.f32.mrb[0].mxu0
  %v739 = vadd.f32 %v611, %v738
  %v740 = vpop.f32.mrb[0].mxu0
  %741 = vmatprep.mubr.bf16.mxu0 0
  %742 = vmatmul.mubr.bf16.gmra.mrb[0].mxu0 %v580
  %v743 = vpop.f32.mrb[0].mxu0
  %v744 = vadd.f32 %v611, %v743
  %v745 = vpop.f32.mrb[0].mxu0
  %v746 = vpop.f32.mrb[0].mxu0
  %v747 = vadd.f32 %v611, %v746
  %v748 = vpop.f32.mrb[0].mxu0
  %749 = vmatprep.mubr.bf16.mxu0 0
  %750 = vmatmul.mubr.bf16.gmra.mrb[0].mxu0 %v581
  %v751 = vpop.f32.mrb[0].mxu0
  %v752 = vadd.f32 %v611, %v751
  %v753 = vpop.f32.mrb[0].mxu0
  %v754 = vpop.f32.mrb[0].mxu0
  %v755 = vadd.f32 %v611, %v754
  %v756 = vpop.f32.mrb[0].mxu0
  %757 = vmatprep.mubr.bf16.mxu0 0
  %758 = vmatmul.mubr.bf16.gmra.mrb[0].mxu0 %v582
  %v759 = vpop.f32.mrb[0].mxu0
  %v760 = vadd.f32 %v611, %v759
  %v761 = vpop.f32.mrb[0].mxu0
  %v762 = vpop.f32.mrb[0].mxu0
  %v763 = vadd.f32 %v611, %v762
  %v764 = vpop.f32.mrb[0].mxu0
  %765 = vmatprep.mubr.bf16.mxu0 0
  %766 = vmatmul.mubr.bf16.gmra.mrb[0].mxu0 %v583
  %v767 = vpop.f32.mrb[0].mxu0
  %v768 = vadd.f32 %v611, %v767
  %v769 = vpop.f32.mrb[0].mxu0
  %v770 = vpop.f32.mrb[0].mxu0
  %v771 = vadd.f32 %v611, %v770
  %v772 = vpop.f32.mrb[0].mxu0
  %773 = vmatprep.mubr.bf16.mxu0 0
  %774 = vmatmul.mubr.bf16.gmra.mrb[0].mxu0 %v584
  %v775 = vpop.f32.mrb[0].mxu0
  %v776 = vadd.f32 %v611, %v775
  %v777 = vpop.f32.mrb[0].mxu0
  %v778 = vpop.f32.mrb[0].mxu0
  %v779 = vadd.f32 %v611, %v778
  %v780 = vpop.f32.mrb[0].mxu0
  %781 = vmatprep.mubr.bf16.mxu0 0
  %782 = vmatmul.mubr.bf16.gmra.mrb[0].mxu0 %v585
  %v783 = vpop.f32.mrb[0].mxu0
  %v784 = vadd.f32 %v611, %v783
  %v785 = vpop.f32.mrb[0].mxu0
  %v786 = vpop.f32.mrb[0].mxu0
  %v787 = vadd.f32 %v611, %v786
  %v788 = vpop.f32.mrb[0].mxu0
  %789 = vmatprep.mubr.bf16.mxu0 0
  %790 = vmatmul.mubr.bf16.gmra.mrb[0].mxu0 %v586
  %v791 = vpop.f32.mrb[0].mxu0
  %v792 = vadd.f32 %v611, %v791
  %v793 = vpop.f32.mrb[0].mxu0
  %v794 = vpop.f32.mrb[0].mxu0
  %v795 = vadd.f32 %v611, %v794
  %v796 = vpop.f32.mrb[0].mxu0
  %797 = vmatprep.mubr.bf16.mxu0 0
  %798 = vmatmul.mubr.bf16.gmra.mrb[0].mxu0 %v587
  %v799 = vpop.f32.mrb[0].mxu0
  %v800 = vadd.f32 %v611, %v799
  %v801 = vpop.f32.mrb[0].mxu0
  %v802 = vpop.f32.mrb[0].mxu0
  %v803 = vadd.f32 %v611, %v802
  %v804 = vpop.f32.mrb[0].mxu0
  %805 = vmatprep.mubr.bf16.mxu0 0
  %806 = vmatmul.mubr.bf16.gmra.mrb[0].mxu0 %v588
  %v807 = vpop.f32.mrb[0].mxu0
  %v808 = vadd.f32 %v611, %v807
  %v809 = vpop.f32.mrb[0].mxu0
  %v810 = vpop.f32.mrb[0].mxu0
  %v811 = vadd.f32 %v611, %v810
  %v812 = vpop.f32.mrb[0].mxu0
  %813 = vmatprep.mubr.bf16.mxu0 0
  %814 = vmatmul.mubr.bf16.gmra.mrb[0].mxu0 %v589
  %v815 = vpop.f32.mrb[0].mxu0
  %v816 = vadd.f32 %v611, %v815
  %v817 = vpop.f32.mrb[0].mxu0
  %v818 = vpop.f32.mrb[0].mxu0
  %v819 = vadd.f32 %v611, %v818
  %v820 = vpop.f32.mrb[0].mxu0
  %821 = vdwg.mxu0
  %822 = vst [vmem:[%s5] sm:$0xff] %v696
  %823 = vst [vmem:[%s5 + $0x8] sm:$0xff] %v699
  %824 = vst [vmem:[%s5 + $0x10] sm:$0xff] %v704
  %825 = vst [vmem:[%s5 + $0x18] sm:$0xff] %v707
  %826 = vst [vmem:[%s5 + $0x20] sm:$0xff] %v712
  %827 = vst [vmem:[%s5 + $0x28] sm:$0xff] %v715
  %828 = vst [vmem:[%s5 + $0x30] sm:$0xff] %v720
  %829 = vst [vmem:[%s5 + $0x38] sm:$0xff] %v723
  %830 = vst [vmem:[%s5 + $0x40] sm:$0xff] %v728
  %831 = vst [vmem:[%s5 + $0x48] sm:$0xff] %v731
  %832 = vst [vmem:[%s5 + $0x50] sm:$0xff] %v736
  %833 = vst [vmem:[%s5 + $0x58] sm:$0xff] %v739
  %834 = vst [vmem:[%s5 + $0x60] sm:$0xff] %v744
  %835 = vst [vmem:[%s5 + $0x68] sm:$0xff] %v747
  %836 = vst [vmem:[%s5 + $0x70] sm:$0xff] %v752
  %837 = vst [vmem:[%s5 + $0x78] sm:$0xff] %v755
  %838 = vst [vmem:[%s5 + $0x80] sm:$0xff] %v760
  %839 = vst [vmem:[%s5 + $0x88] sm:$0xff] %v763
  %840 = vst [vmem:[%s5 + $0x90] sm:$0xff] %v768
  %841 = vst [vmem:[%s5 + $0x98] sm:$0xff] %v771
  %842 = vst [vmem:[%s5 + $0xa0] sm:$0xff] %v776
  %843 = vst [vmem:[%s5 + $0xa8] sm:$0xff] %v779
  %844 = vst [vmem:[%s5 + $0xb0] sm:$0xff] %v784
  %845 = vst [vmem:[%s5 + $0xb8] sm:$0xff] %v787
  %846 = vst [vmem:[%s5 + $0xc0] sm:$0xff] %v792
  %847 = vst [vmem:[%s5 + $0xc8] sm:$0xff] %v795
  %848 = vst [vmem:[%s5 + $0xd0] sm:$0xff] %v800
  %849 = vst [vmem:[%s5 + $0xd8] sm:$0xff] %v803
  %850 = vst [vmem:[%s5 + $0xe0] sm:$0xff] %v808
  %851 = vst [vmem:[%s5 + $0xe8] sm:$0xff] %v811
  %852 = vst [vmem:[%s5 + $0xf0] sm:$0xff] %v816
  %853 = vst [vmem:[%s5 + $0xf8] sm:$0xff] %v819
  // Predicated region
  $region22: #{forward.1} parent=0 // pred_check
    _
  $region23: #{forward.1} parent=0 // pred_check_branch
    %855 = sbr.rel (0) target = $region25
  $region24: #{forward.1} parent=0 // pred_region
    _
  $region25: #{forward.1} parent=0 // pred_fallthru
    _
  // Predicated region
  $region26: #{forward.1} parent=0 // pred_check
    _
  $region27: #{forward.1} parent=0 // pred_check_branch
    %857 = sbr.rel (0) target = $region29
  $region28: #{forward.1} parent=0 // pred_region
    _
  $region29: #{forward.1} parent=0 // pred_fallthru
    _

</llo_original>
